<compile_context>
chip_gen: v5e
topology: v5e:2x2
jax: 0.10.0
libtpu: 0.0.40
codegen_flags: <defaults>
</compile_context>

<pallas_src>
import functools

import jax
import jax.numpy as jnp
import numpy as np
from jax.experimental import pallas as pl
from jax.experimental.pallas import tpu as pltpu


def feature_encoder_kernel(x_ref, gamma_ref, beta_ref, dww_ref, dwb_ref,
                           pww_ref, pwb_ref, o_ref, acc_ref, *,
                           kernel_size, eps, mxu_dtype):
    layer = pl.program_id(1)
    num_layers = pl.num_programs(1)
    L, D = acc_ref.shape
    pad_l = (kernel_size - 1) // 2

    # Load the input once per batch block; keep the residual stream in f32.
    @pl.when(layer == 0)
    def _():
        acc_ref[...] = x_ref[0].astype(jnp.float32)

    out = acc_ref[...]                       # (L, D) f32
    residual = out

    # --- LayerNorm over the feature dim (biased variance, eps inside rsqrt) ---
    mu = jnp.mean(out, axis=-1, keepdims=True)
    xc = out - mu
    var = jnp.mean(xc * xc, axis=-1, keepdims=True)
    y = xc * jax.lax.rsqrt(var + eps)
    y = y * gamma_ref[0] + beta_ref[0]       # (1, D) broadcasts

    # --- depthwise conv along L ('same' padding, cross-correlation) ---
    # Each tap j is a static sublane roll (XLU) plus a boundary mask; no
    # pad/concatenate/slice copies and no zero-filled accumulator.
    lidx = jax.lax.broadcasted_iota(jnp.int32, (L, 1), 0)
    dww = dww_ref[0]                         # (k, D)
    dw = None
    for j in range(kernel_size):
        shift = pad_l - j                    # static Python int
        tap = y if shift % L == 0 else pltpu.roll(y, shift=shift % L, axis=0)
        if shift > 0:
            tap = jnp.where(lidx >= shift, tap, 0.0)
        elif shift < 0:
            tap = jnp.where(lidx < L + shift, tap, 0.0)
        contrib = tap * dww[j:j + 1, :]
        dw = contrib if dw is None else dw + contrib
    dw = dw + dwb_ref[0]

    # --- pointwise (1x1) conv on the MXU: bf16 operands, f32 accumulation ---
    pw = jnp.dot(dw.astype(mxu_dtype), pww_ref[0].astype(mxu_dtype),
                 preferred_element_type=jnp.float32)

    # dropout(p=0.0) is identity
    out_new = pw + pwb_ref[0] + residual
    acc_ref[...] = out_new

    @pl.when(layer == num_layers - 1)
    def _():
        o_ref[0] = out_new.astype(o_ref.dtype)


def feature_encoder(x, params, *, kernel_size, eps=1e-6,
                    mxu_dtype=jnp.bfloat16):
    B, L, D = x.shape
    num_layers, k, _ = params["dw_w"].shape
    assert k == kernel_size

    # Per-layer vector params as (NL, 1, D) so each block is (1, 1, D) with the
    # last two dims equal to the full array dims (clean (8,128)-rule fit).
    gamma = params["gamma"].reshape(num_layers, 1, D)
    beta = params["beta"].reshape(num_layers, 1, D)
    dw_b = params["dw_b"].reshape(num_layers, 1, D)
    pw_b = params["pw_b"].reshape(num_layers, 1, D)
    dw_w = params["dw_w"]                    # (NL, k, D)
    pw_w = params["pw_w"]                    # (NL, D, D)

    kern = functools.partial(feature_encoder_kernel,
                             kernel_size=kernel_size, eps=eps,
                             mxu_dtype=mxu_dtype)

    # Advisory cost estimate for XLA's scheduler.
    flops = int(num_layers * B * L * (2 * D * D + (2 * kernel_size + 10) * D))
    bytes_accessed = int(2 * B * L * D * x.dtype.itemsize
                         + num_layers * (D * D + kernel_size * D + 4 * D) * 4)
    cost = pl.CostEstimate(flops=flops,
                           transcendentals=int(num_layers * B * L),
                           bytes_accessed=bytes_accessed)

    # Explicit VMEM budget: activations + double-buffered per-layer weights,
    # with headroom; capped at 48 MiB so a single tile fits v7x's 64 MiB VMEM.
    act_bytes = L * D * 4
    w_bytes = (D * D + kernel_size * D + 4 * D) * 4
    vmem_limit = int(min(max(12 * act_bytes + 4 * w_bytes + (2 << 20),
                             16 << 20),
                         48 << 20))

    layer_map = lambda b, l: (l, 0, 0)
    batch_map = lambda b, l: (b, 0, 0)

    return pl.pallas_call(
        kern,
        out_shape=jax.ShapeDtypeStruct(x.shape, x.dtype),
        grid_spec=pltpu.PrefetchScalarGridSpec(
            num_scalar_prefetch=0,
            grid=(B, num_layers),
            in_specs=[
                pl.BlockSpec((1, L, D), batch_map),             # x (fetched once per batch block)
                pl.BlockSpec((1, 1, D), layer_map),             # gamma
                pl.BlockSpec((1, 1, D), layer_map),             # beta
                pl.BlockSpec((1, kernel_size, D), layer_map),   # depthwise weight
                pl.BlockSpec((1, 1, D), layer_map),             # depthwise bias
                pl.BlockSpec((1, D, D), layer_map),             # pointwise weight (streamed per layer)
                pl.BlockSpec((1, 1, D), layer_map),             # pointwise bias
            ],
            out_specs=pl.BlockSpec((1, L, D), batch_map),
            scratch_shapes=[pltpu.VMEM((L, D), jnp.float32)],   # resident f32 residual stream
        ),
        compiler_params=pltpu.CompilerParams(
            dimension_semantics=("parallel", "arbitrary"),
            vmem_limit_bytes=vmem_limit),
        cost_estimate=cost,
    )(x, gamma, beta, dw_w, dw_b, pw_w, pw_b)


def feature_encoder_reference(x, params, *, kernel_size, eps=1e-6):
    """Pure-JAX reference matching the PyTorch forward semantics."""
    B, L, D = x.shape
    num_layers = params["gamma"].shape[0]
    pad_l = (kernel_size - 1) // 2
    pad_r = (kernel_size - 1) - pad_l
    out = x
    for i in range(num_layers):
        residual = out
        mu = out.mean(-1, keepdims=True)
        var = ((out - mu) ** 2).mean(-1, keepdims=True)
        y = (out - mu) / jnp.sqrt(var + eps)
        y = y * params["gamma"][i] + params["beta"][i]
        ypad = jnp.pad(y, ((0, 0), (pad_l, pad_r), (0, 0)))
        dw = jnp.zeros_like(y)
        for j in range(kernel_size):
            dw = dw + ypad[:, j:j + L, :] * params["dw_w"][i, j]
        dw = dw + params["dw_b"][i]
        pw = jnp.einsum("bld,de->ble", dw, params["pw_w"][i]) + params["pw_b"][i]
        out = pw + residual
    return out


def init_params(key, *, dim, num_layers, kernel_size):
    """Deterministic synthetic parameters (shapes mirror the PyTorch module).

    PyTorch shapes -> stored layout:
      LayerNorm weight/bias (D,)            -> gamma/beta  (NL, D)
      depthwise Conv2d weight (D, 1, 1, k)  -> dw_w        (NL, k, D)       (transposed)
      depthwise Conv2d bias   (D,)          -> dw_b        (NL, D)
      pointwise Conv2d weight (D, D, 1, 1)  -> pw_w        (NL, D_in, D_out) (transposed)
      pointwise Conv2d bias   (D,)          -> pw_b        (NL, D)
    """
    ks = jax.random.split(key, 6)
    gamma = 1.0 + 0.1 * jax.random.normal(ks[0], (num_layers, dim), jnp.float32)
    beta = 0.1 * jax.random.normal(ks[1], (num_layers, dim), jnp.float32)
    dw_w = 0.1 * jax.random.normal(ks[2], (num_layers, kernel_size, dim), jnp.float32)
    dw_b = 0.1 * jax.random.normal(ks[3], (num_layers, dim), jnp.float32)
    pw_w = 0.1 * jax.random.normal(ks[4], (num_layers, dim, dim), jnp.float32)
    pw_b = 0.1 * jax.random.normal(ks[5], (num_layers, dim), jnp.float32)
    return dict(gamma=gamma, beta=beta, dw_w=dw_w, dw_b=dw_b, pw_w=pw_w, pw_b=pw_b)


if __name__ == "__main__":
    B, L, D = 2, 8, 32          # batch, sequence (max_pos_len-ish), dim
    KERNEL_SIZE = 7
    NUM_LAYERS = 4

    key = jax.random.PRNGKey(0)
    kx, kp = jax.random.split(key)
    x = jax.random.normal(kx, (B, L, D), jnp.float32)
    params = init_params(kp, dim=D, num_layers=NUM_LAYERS, kernel_size=KERNEL_SIZE)

    ref = feature_encoder_reference(x, params, kernel_size=KERNEL_SIZE)

    # Exactness check: f32 MXU operands vs. pure-JAX reference (tight tol).
    out_f32 = jax.block_until_ready(
        feature_encoder(x, params, kernel_size=KERNEL_SIZE,
                        mxu_dtype=jnp.float32))
    np.testing.assert_allclose(np.asarray(out_f32), np.asarray(ref),
                               rtol=1e-4, atol=1e-4)

    # Performance path: bf16 MXU operands with f32 accumulation (looser tol).
    out_bf16 = jax.block_until_ready(
        feature_encoder(x, params, kernel_size=KERNEL_SIZE,
                        mxu_dtype=jnp.bfloat16))
    np.testing.assert_allclose(np.asarray(out_bf16), np.asarray(ref),
                               rtol=5e-2, atol=5e-2)

    print("KERNEL_OK")
</pallas_src>

<mosaic_0001>
module attributes {stable_mosaic.version = 11 : i64} {
  func.func @feature_encoder_kernel(%arg0: i32, %arg1: i32, %arg2: memref<1x8x32xf32, #tpu.memory_space<vmem>>, %arg3: memref<1x1x32xf32, #tpu.memory_space<vmem>>, %arg4: memref<1x1x32xf32, #tpu.memory_space<vmem>>, %arg5: memref<1x7x32xf32, #tpu.memory_space<vmem>>, %arg6: memref<1x1x32xf32, #tpu.memory_space<vmem>>, %arg7: memref<1x32x32xf32, #tpu.memory_space<vmem>>, %arg8: memref<1x1x32xf32, #tpu.memory_space<vmem>>, %arg9: memref<1x8x32xf32, #tpu.memory_space<vmem>>, %arg10: memref<8x32xf32, #tpu.memory_space<vmem>>) attributes {dimension_semantics = [#tpu.dimension_semantics<parallel>, #tpu.dimension_semantics<arbitrary>], iteration_bounds = array<i64: 2, 4>, scalar_prefetch = 0 : i64, scratch_operands = 1 : i64, tpu.core_type = #tpu.core_type<tc>, window_params = [{transform_indices = @transform_0, window_bounds = array<i64: 1, 8, 32>}, {transform_indices = @transform_1, window_bounds = array<i64: 1, 1, 32>}, {transform_indices = @transform_2, window_bounds = array<i64: 1, 1, 32>}, {transform_indices = @transform_3, window_bounds = array<i64: 1, 7, 32>}, {transform_indices = @transform_4, window_bounds = array<i64: 1, 1, 32>}, {transform_indices = @transform_5, window_bounds = array<i64: 1, 32, 32>}, {transform_indices = @transform_6, window_bounds = array<i64: 1, 1, 32>}, {transform_indices = @transform_7, window_bounds = array<i64: 1, 8, 32>}]} {
    %c0_i32 = arith.constant 0 : i32
    %0 = arith.cmpi eq, %arg1, %c0_i32 : i32
    %1 = arith.extui %0 : i1 to i32
    %c0_i32_0 = arith.constant 0 : i32
    %2 = arith.cmpi ne, %1, %c0_i32_0 : i32
    scf.if %2 {
      %c0_41 = arith.constant 0 : index
      %c0_42 = arith.constant 0 : index
      %c0_43 = arith.constant 0 : index
      %116 = vector.load %arg2[%c0_41, %c0_42, %c0_43] : memref<1x8x32xf32, #tpu.memory_space<vmem>>, vector<1x8x32xf32>
      %117 = vector.shape_cast %116 : vector<1x8x32xf32> to vector<8x32xf32>
      %c0_44 = arith.constant 0 : index
      %c0_45 = arith.constant 0 : index
      %118 = vector.load %arg10[%c0_44, %c0_45] : memref<8x32xf32, #tpu.memory_space<vmem>>, vector<8x32xf32>
      tpu.vector_store %arg10[%c0_44, %c0_45], %117 {strides = array<i32>} : memref<8x32xf32, #tpu.memory_space<vmem>>, vector<8x32xf32>,
    } else {
    }
    %c0 = arith.constant 0 : index
    %c0_1 = arith.constant 0 : index
    %3 = vector.load %arg10[%c0, %c0_1] : memref<8x32xf32, #tpu.memory_space<vmem>>, vector<8x32xf32>
    %cst = arith.constant dense<0.000000e+00> : vector<8xf32>
    %4 = vector.multi_reduction <add>, %3, %cst [1] : vector<8x32xf32> to vector<8xf32>
    %5 = vector.shape_cast %4 : vector<8xf32> to vector<8x1xf32>
    %cst_2 = arith.constant 3.200000e+01 : f32
    %6 = vector.broadcast %cst_2 : f32 to vector<8x1xf32>
    %7 = arith.divf %5, %6 : vector<8x1xf32>
    %8 = vector.broadcast %7 : vector<8x1xf32> to vector<8x32xf32>
    %9 = arith.subf %3, %8 : vector<8x32xf32>
    %10 = arith.mulf %9, %9 : vector<8x32xf32>
    %cst_3 = arith.constant dense<0.000000e+00> : vector<8xf32>
    %11 = vector.multi_reduction <add>, %10, %cst_3 [1] : vector<8x32xf32> to vector<8xf32>
    %12 = vector.shape_cast %11 : vector<8xf32> to vector<8x1xf32>
    %cst_4 = arith.constant 3.200000e+01 : f32
    %13 = vector.broadcast %cst_4 : f32 to vector<8x1xf32>
    %14 = arith.divf %12, %13 : vector<8x1xf32>
    %cst_5 = arith.constant 9.99999997E-7 : f32
    %15 = vector.broadcast %cst_5 : f32 to vector<8x1xf32>
    %16 = arith.addf %14, %15 : vector<8x1xf32>
    %17 = math.rsqrt %16 : vector<8x1xf32>
    %18 = vector.broadcast %17 : vector<8x1xf32> to vector<8x32xf32>
    %19 = arith.mulf %9, %18 : vector<8x32xf32>
    %c0_6 = arith.constant 0 : index
    %c0_7 = arith.constant 0 : index
    %c0_8 = arith.constant 0 : index
    %20 = vector.load %arg3[%c0_6, %c0_7, %c0_8] : memref<1x1x32xf32, #tpu.memory_space<vmem>>, vector<1x1x32xf32>
    %21 = vector.shape_cast %20 : vector<1x1x32xf32> to vector<1x32xf32>
    %22 = vector.broadcast %21 : vector<1x32xf32> to vector<8x32xf32>
    %23 = arith.mulf %19, %22 : vector<8x32xf32>
    %c0_9 = arith.constant 0 : index
    %c0_10 = arith.constant 0 : index
    %c0_11 = arith.constant 0 : index
    %24 = vector.load %arg4[%c0_9, %c0_10, %c0_11] : memref<1x1x32xf32, #tpu.memory_space<vmem>>, vector<1x1x32xf32>
    %25 = vector.shape_cast %24 : vector<1x1x32xf32> to vector<1x32xf32>
    %26 = vector.broadcast %25 : vector<1x32xf32> to vector<8x32xf32>
    %27 = arith.addf %23, %26 : vector<8x32xf32>
    %28 = tpu.iota {dimensions = array<i32: 0>} : vector<8x1xi32>
    %c0_12 = arith.constant 0 : index
    %c0_13 = arith.constant 0 : index
    %c0_14 = arith.constant 0 : index
    %29 = vector.load %arg5[%c0_12, %c0_13, %c0_14] : memref<1x7x32xf32, #tpu.memory_space<vmem>>, vector<1x7x32xf32>
    %30 = vector.shape_cast %29 : vector<1x7x32xf32> to vector<7x32xf32>
    %c3_i32 = arith.constant 3 : i32
    %31 = tpu.dynamic_rotate %27 by %c3_i32 dim 0 : vector<8x32xf32>, i32 -> vector<8x32xf32>
    %c3_i32_15 = arith.constant 3 : i32
    %32 = vector.broadcast %c3_i32_15 : i32 to vector<8x1xi32>
    %33 = arith.cmpi sge, %28, %32 : vector<8x1xi32>
    %cst_16 = arith.constant 0.000000e+00 : f32
    %34 = vector.shape_cast %33 : vector<8x1xi1> to vector<8x1xi1>
    %35 = vector.broadcast %34 : vector<8x1xi1> to vector<8x32xi1>
    %36 = vector.broadcast %cst_16 : f32 to vector<8x32xf32>
    %37 = arith.select %35, %31, %36 : vector<8x32xi1>, vector<8x32xf32>
    %38 = vector.extract_strided_slice %30 {offsets = [0, 0], sizes = [1, 32], strides = [1, 1]} : vector<7x32xf32> to vector<1x32xf32>
    %39 = vector.broadcast %38 : vector<1x32xf32> to vector<8x32xf32>
    %40 = arith.mulf %37, %39 : vector<8x32xf32>
    %c2_i32 = arith.constant 2 : i32
    %41 = tpu.dynamic_rotate %27 by %c2_i32 dim 0 : vector<8x32xf32>, i32 -> vector<8x32xf32>
    %c2_i32_17 = arith.constant 2 : i32
    %42 = vector.broadcast %c2_i32_17 : i32 to vector<8x1xi32>
    %43 = arith.cmpi sge, %28, %42 : vector<8x1xi32>
    %cst_18 = arith.constant 0.000000e+00 : f32
    %44 = vector.shape_cast %43 : vector<8x1xi1> to vector<8x1xi1>
    %45 = vector.broadcast %44 : vector<8x1xi1> to vector<8x32xi1>
    %46 = vector.broadcast %cst_18 : f32 to vector<8x32xf32>
    %47 = arith.select %45, %41, %46 : vector<8x32xi1>, vector<8x32xf32>
    %48 = vector.extract_strided_slice %30 {offsets = [1, 0], sizes = [1, 32], strides = [1, 1]} : vector<7x32xf32> to vector<1x32xf32>
    %49 = vector.broadcast %48 : vector<1x32xf32> to vector<8x32xf32>
    %50 = arith.mulf %47, %49 : vector<8x32xf32>
    %51 = arith.addf %40, %50 : vector<8x32xf32>
    %c1_i32 = arith.constant 1 : i32
    %52 = tpu.dynamic_rotate %27 by %c1_i32 dim 0 : vector<8x32xf32>, i32 -> vector<8x32xf32>
    %c1_i32_19 = arith.constant 1 : i32
    %53 = vector.broadcast %c1_i32_19 : i32 to vector<8x1xi32>
    %54 = arith.cmpi sge, %28, %53 : vector<8x1xi32>
    %cst_20 = arith.constant 0.000000e+00 : f32
    %55 = vector.shape_cast %54 : vector<8x1xi1> to vector<8x1xi1>
    %56 = vector.broadcast %55 : vector<8x1xi1> to vector<8x32xi1>
    %57 = vector.broadcast %cst_20 : f32 to vector<8x32xf32>
    %58 = arith.select %56, %52, %57 : vector<8x32xi1>, vector<8x32xf32>
    %59 = vector.extract_strided_slice %30 {offsets = [2, 0], sizes = [1, 32], strides = [1, 1]} : vector<7x32xf32> to vector<1x32xf32>
    %60 = vector.broadcast %59 : vector<1x32xf32> to vector<8x32xf32>
    %61 = arith.mulf %58, %60 : vector<8x32xf32>
    %62 = arith.addf %51, %61 : vector<8x32xf32>
    %63 = vector.extract_strided_slice %30 {offsets = [3, 0], sizes = [1, 32], strides = [1, 1]} : vector<7x32xf32> to vector<1x32xf32>
    %64 = vector.broadcast %63 : vector<1x32xf32> to vector<8x32xf32>
    %65 = arith.mulf %27, %64 : vector<8x32xf32>
    %66 = arith.addf %62, %65 : vector<8x32xf32>
    %c7_i32 = arith.constant 7 : i32
    %67 = tpu.dynamic_rotate %27 by %c7_i32 dim 0 : vector<8x32xf32>, i32 -> vector<8x32xf32>
    %c7_i32_21 = arith.constant 7 : i32
    %68 = vector.broadcast %c7_i32_21 : i32 to vector<8x1xi32>
    %69 = arith.cmpi slt, %28, %68 : vector<8x1xi32>
    %cst_22 = arith.constant 0.000000e+00 : f32
    %70 = vector.shape_cast %69 : vector<8x1xi1> to vector<8x1xi1>
    %71 = vector.broadcast %70 : vector<8x1xi1> to vector<8x32xi1>
    %72 = vector.broadcast %cst_22 : f32 to vector<8x32xf32>
    %73 = arith.select %71, %67, %72 : vector<8x32xi1>, vector<8x32xf32>
    %74 = vector.extract_strided_slice %30 {offsets = [4, 0], sizes = [1, 32], strides = [1, 1]} : vector<7x32xf32> to vector<1x32xf32>
    %75 = vector.broadcast %74 : vector<1x32xf32> to vector<8x32xf32>
    %76 = arith.mulf %73, %75 : vector<8x32xf32>
    %77 = arith.addf %66, %76 : vector<8x32xf32>
    %c6_i32 = arith.constant 6 : i32
    %78 = tpu.dynamic_rotate %27 by %c6_i32 dim 0 : vector<8x32xf32>, i32 -> vector<8x32xf32>
    %c6_i32_23 = arith.constant 6 : i32
    %79 = vector.broadcast %c6_i32_23 : i32 to vector<8x1xi32>
    %80 = arith.cmpi slt, %28, %79 : vector<8x1xi32>
    %cst_24 = arith.constant 0.000000e+00 : f32
    %81 = vector.shape_cast %80 : vector<8x1xi1> to vector<8x1xi1>
    %82 = vector.broadcast %81 : vector<8x1xi1> to vector<8x32xi1>
    %83 = vector.broadcast %cst_24 : f32 to vector<8x32xf32>
    %84 = arith.select %82, %78, %83 : vector<8x32xi1>, vector<8x32xf32>
    %85 = vector.extract_strided_slice %30 {offsets = [5, 0], sizes = [1, 32], strides = [1, 1]} : vector<7x32xf32> to vector<1x32xf32>
    %86 = vector.broadcast %85 : vector<1x32xf32> to vector<8x32xf32>
    %87 = arith.mulf %84, %86 : vector<8x32xf32>
    %88 = arith.addf %77, %87 : vector<8x32xf32>
    %c5_i32 = arith.constant 5 : i32
    %89 = tpu.dynamic_rotate %27 by %c5_i32 dim 0 : vector<8x32xf32>, i32 -> vector<8x32xf32>
    %c5_i32_25 = arith.constant 5 : i32
    %90 = vector.broadcast %c5_i32_25 : i32 to vector<8x1xi32>
    %91 = arith.cmpi slt, %28, %90 : vector<8x1xi32>
    %cst_26 = arith.constant 0.000000e+00 : f32
    %92 = vector.shape_cast %91 : vector<8x1xi1> to vector<8x1xi1>
    %93 = vector.broadcast %92 : vector<8x1xi1> to vector<8x32xi1>
    %94 = vector.broadcast %cst_26 : f32 to vector<8x32xf32>
    %95 = arith.select %93, %89, %94 : vector<8x32xi1>, vector<8x32xf32>
    %96 = vector.extract_strided_slice %30 {offsets = [6, 0], sizes = [1, 32], strides = [1, 1]} : vector<7x32xf32> to vector<1x32xf32>
    %97 = vector.broadcast %96 : vector<1x32xf32> to vector<8x32xf32>
    %98 = arith.mulf %95, %97 : vector<8x32xf32>
    %99 = arith.addf %88, %98 : vector<8x32xf32>
    %c0_27 = arith.constant 0 : index
    %c0_28 = arith.constant 0 : index
    %c0_29 = arith.constant 0 : index
    %100 = vector.load %arg6[%c0_27, %c0_28, %c0_29] : memref<1x1x32xf32, #tpu.memory_space<vmem>>, vector<1x1x32xf32>
    %101 = vector.shape_cast %100 : vector<1x1x32xf32> to vector<1x32xf32>
    %102 = vector.broadcast %101 : vector<1x32xf32> to vector<8x32xf32>
    %103 = arith.addf %99, %102 : vector<8x32xf32>
    %c0_30 = arith.constant 0 : index
    %c0_31 = arith.constant 0 : index
    %c0_32 = arith.constant 0 : index
    %104 = vector.load %arg7[%c0_30, %c0_31, %c0_32] : memref<1x32x32xf32, #tpu.memory_space<vmem>>, vector<1x32x32xf32>
    %105 = vector.shape_cast %104 : vector<1x32x32xf32> to vector<32x32xf32>
    %cst_33 = arith.constant dense<0.000000e+00> : vector<8x32xf32>
    %106 = tpu.matmul %103, %105, %cst_33 {dimension_numbers = #tpu.dot_dimension_numbers<[1], [0], [0], [1], [0, 0, 1, 1], [], []>} : vector<8x32xf32>, vector<32x32xf32>, vector<8x32xf32> -> vector<8x32xf32>
    %c0_34 = arith.constant 0 : index
    %c0_35 = arith.constant 0 : index
    %c0_36 = arith.constant 0 : index
    %107 = vector.load %arg8[%c0_34, %c0_35, %c0_36] : memref<1x1x32xf32, #tpu.memory_space<vmem>>, vector<1x1x32xf32>
    %108 = vector.shape_cast %107 : vector<1x1x32xf32> to vector<1x32xf32>
    %109 = vector.broadcast %108 : vector<1x32xf32> to vector<8x32xf32>
    %110 = arith.addf %106, %109 : vector<8x32xf32>
    %111 = arith.addf %110, %3 : vector<8x32xf32>
    %c0_37 = arith.constant 0 : index
    %c0_38 = arith.constant 0 : index
    %112 = vector.load %arg10[%c0_37, %c0_38] : memref<8x32xf32, #tpu.memory_space<vmem>>, vector<8x32xf32>
    tpu.vector_store %arg10[%c0_37, %c0_38], %111 {strides = array<i32>} : memref<8x32xf32, #tpu.memory_space<vmem>>, vector<8x32xf32>,
    %c3_i32_39 = arith.constant 3 : i32
    %113 = arith.cmpi eq, %arg1, %c3_i32_39 : i32
    %114 = arith.extui %113 : i1 to i32
    %c0_i32_40 = arith.constant 0 : i32
    %115 = arith.cmpi ne, %114, %c0_i32_40 : i32
    scf.if %115 {
      %c0_41 = arith.constant 0 : index
      %c0_42 = arith.constant 0 : index
      %c0_43 = arith.constant 0 : index
      %116 = vector.load %arg9[%c0_41, %c0_42, %c0_43] : memref<1x8x32xf32, #tpu.memory_space<vmem>>, vector<1x8x32xf32>
      %117 = vector.shape_cast %116 : vector<1x8x32xf32> to vector<8x32xf32>
      %118 = vector.shape_cast %111 : vector<8x32xf32> to vector<1x8x32xf32>
      tpu.vector_store %arg9[%c0_41, %c0_42, %c0_43], %118 {strides = array<i32>} : memref<1x8x32xf32, #tpu.memory_space<vmem>>, vector<1x8x32xf32>,
    } else {
    }
    return
  }
  func.func @transform_0(%arg0: i32, %arg1: i32) -> (i32, i32, i32) {
    %c0_i32 = arith.constant 0 : i32
    %c0_i32_0 = arith.constant 0 : i32
    %c0_i32_1 = arith.constant 0 : i32
    return %arg0, %c0_i32, %c0_i32_0 : i32, i32, i32
  }
  func.func @transform_1(%arg0: i32, %arg1: i32) -> (i32, i32, i32) {
    %c0_i32 = arith.constant 0 : i32
    %c0_i32_0 = arith.constant 0 : i32
    %c0_i32_1 = arith.constant 0 : i32
    return %arg1, %c0_i32, %c0_i32_0 : i32, i32, i32
  }
  func.func @transform_2(%arg0: i32, %arg1: i32) -> (i32, i32, i32) {
    %c0_i32 = arith.constant 0 : i32
    %c0_i32_0 = arith.constant 0 : i32
    %c0_i32_1 = arith.constant 0 : i32
    return %arg1, %c0_i32, %c0_i32_0 : i32, i32, i32
  }
  func.func @transform_3(%arg0: i32, %arg1: i32) -> (i32, i32, i32) {
    %c0_i32 = arith.constant 0 : i32
    %c0_i32_0 = arith.constant 0 : i32
    %c0_i32_1 = arith.constant 0 : i32
    return %arg1, %c0_i32, %c0_i32_0 : i32, i32, i32
  }
  func.func @transform_4(%arg0: i32, %arg1: i32) -> (i32, i32, i32) {
    %c0_i32 = arith.constant 0 : i32
    %c0_i32_0 = arith.constant 0 : i32
    %c0_i32_1 = arith.constant 0 : i32
    return %arg1, %c0_i32, %c0_i32_0 : i32, i32, i32
  }
  func.func @transform_5(%arg0: i32, %arg1: i32) -> (i32, i32, i32) {
    %c0_i32 = arith.constant 0 : i32
    %c0_i32_0 = arith.constant 0 : i32
    %c0_i32_1 = arith.constant 0 : i32
    return %arg1, %c0_i32, %c0_i32_0 : i32, i32, i32
  }
  func.func @transform_6(%arg0: i32, %arg1: i32) -> (i32, i32, i32) {
    %c0_i32 = arith.constant 0 : i32
    %c0_i32_0 = arith.constant 0 : i32
    %c0_i32_1 = arith.constant 0 : i32
    return %arg1, %c0_i32, %c0_i32_0 : i32, i32, i32
  }
  func.func @transform_7(%arg0: i32, %arg1: i32) -> (i32, i32, i32) {
    %c0_i32 = arith.constant 0 : i32
    %c0_i32_0 = arith.constant 0 : i32
    %c0_i32_1 = arith.constant 0 : i32
    return %arg0, %c0_i32, %c0_i32_0 : i32, i32, i32
  }
}

</mosaic_0001>

<llo_original>
// kernel: tpu_custom_call.1
$region0: #{tpu_custom_call.1}
  #allocation0 [shape = 'u32[]', space=smem, size = 0x4, offset = 0x4, fixed_abs, tag = 'smem constant byte address 0x4 - core index']
  #allocation1 [shape = 'u32[72,128]{1,0:T(1,128)}', space=vmem, size = 0x9000, scoped, tag = 'internal scratch']
  #allocation2 [shape = 'f32[8,32]{1,0:T(8,128)}', space=vmem, size = 0x1000, scoped, tag = 'scratch operand']
  %s0 = inlined_call_operand.vmem [shape: f32[2,8,32], index: 0, kind: input, shape index: {}]
  %s1 = inlined_call_operand.vmem [shape: f32[4,1,32], index: 1, kind: input, shape index: {}]
  %s2 = inlined_call_operand.vmem [shape: f32[4,1,32], index: 2, kind: input, shape index: {}]
  %s3 = inlined_call_operand.vmem [shape: f32[4,7,32], index: 3, kind: input, shape index: {}]
  %s4 = inlined_call_operand.vmem [shape: f32[4,1,32], index: 4, kind: input, shape index: {}]
  %s5 = inlined_call_operand.hbm [shape: f32[4,32,32], index: 5, kind: input, shape index: {}]
  %s6 = inlined_call_operand.vmem [shape: f32[4,1,32], index: 6, kind: input, shape index: {}]
  %s7 = inlined_call_operand.hbm [shape: f32[2,8,32], index: 7, kind: output, shape index: {}]
  %s8 = sld [smem:[#allocation0]]
  $region73: #{tpu_custom_call.1} parent=0
    _
  %s10 = ssub.s32 1, %s8
  %s11 = scalar_select 0, %s10, %s8
  $region1: #{tpu_custom_call.1} parent=0
    #allocation3 [shape = 'u8[32768]{0}', space=vmem, size = 0x8000, scoped, tag = 'input window, operand 5']
    #allocation4 [shape = 's32[2]{0}', space=sflag, size = 0x8, scoped, tag = 'scoped memory for tpu_custom_call.1']
    #allocation5 [shape = 's32[2]{0}', space=sflag, size = 0x8, scoped, tag = 'scoped memory for tpu_custom_call.1']
    #allocation6 [shape = 'u8[8192]{0}', space=vmem, size = 0x2000, scoped, tag = 'output window, operand 0']
    %12 = vsyncpa [#allocation4], 0
    %s13 = scalar_lea.sflag [#allocation4], 1
    %14 = vsyncpa %s13, 0
    %15 = vsyncpa [#allocation5], 0
    %s16 = scalar_lea.sflag [#allocation5], 1
    %17 = vsyncpa %s16, 0
    loop: start=0, step=1, limit=10
    $region2: #{tpu_custom_call.1} parent=1 // loop_pre_header
      _
    $region3: #{tpu_custom_call.1} parent=1 // loop_header
      %s19 = sphi 0, %s23
      %p20 = scmp.ge.s32.totalorder %s19, 10
      %s26 = sphi 0, %s38
      %s27 = sphi 0, %s34
      %s28 = sphi 0, %s26
      %s29 = sphi 0, %s27
      %s30 = sphi 0, %s28
      %s31 = sphi 0, %s29
      %s41 = sphi 0, %s43
      %s44 = sphi 0, %s41
      %s45 = sphi 0, %s44
      %s61 = sphi 0, %s45
      %s67 = sphi 0, %s69
      %s70 = sphi 0, %s67
      %s71 = sphi 0, %s70
      %s87 = sphi 0, %s71
      %s93 = sphi 0, %s95
      %s96 = sphi 0, %s93
      %s97 = sphi 0, %s96
      %s113 = sphi 0, %s97
      %s119 = sphi 0, %s121
      %s122 = sphi 0, %s119
      %s123 = sphi 0, %s122
      %s139 = sphi 0, %s123
      %s145 = sphi 0, %s147
      %s148 = sphi 0, %s145
      %s149 = sphi 0, %s148
      %s165 = sphi 0, %s149
      %s171 = sphi 0, %s173
      %s174 = sphi 0, %s171
      %s175 = sphi 0, %s174
      %s191 = sphi 0, %s175
      %s197 = sphi 0, %s199
      %s200 = sphi 0, %s197
      %s201 = sphi 0, %s200
      %s217 = sphi 0, %s201
      %s223 = sphi 0, %s225
      %s226 = sphi 0, %s223
      %s227 = sphi 0, %s226
      %s243 = sphi 0, %s227
    $region4: #{tpu_custom_call.1} parent=1 // loop_header_branch
      %22 = sbr.rel (%p20) target = $region8
    $region5: #{tpu_custom_call.1} parent=1 // loop_body
      %s24 = ssub.s32 %s19, 1
      %s25 = ssub.s32 %s19, 2
      %s32 = sadd.s32 1, %s27
      %p33 = scmp.ge.s32.totalorder %s32, 4
      %s34 = scalar_select %p33, 0, %s32
      %s35 = sadd.s32 1, %s26
      %s36 = scalar_select %p33, %s35, %s26
      %p37 = scmp.ge.s32.totalorder %s36, 2
      %s38 = scalar_select %p37, 0, %s36
      %s39 = ssub.s32 %s26, %s38
      %p40 = scmp.eq.s32.totalorder %s39, 0
      %s42 = sadd.s32 %s41, 1
      %s43 = scalar_select %p40, %s41, %s42
      %p46 = pneg %p40
      %p47 = scmp.eq.s32.totalorder %s19, 7
      %p48 = por %p46, %p47
      %p49 = scmp.ne.s32.totalorder %s41, %s44
      %p50 = scmp.eq.s32.totalorder %s19, 0
      %p51 = por %p49, %p50
      %p52 = scmp.ne.s32.totalorder %s41, %s44
      %p53 = scmp.eq.s32.totalorder %s24, 7
      %p54 = por %p52, %p53
      %p55 = scmp.ne.s32.totalorder %s44, %s45
      %p56 = scmp.eq.s32.totalorder %s24, 0
      %p57 = por %p55, %p56
      %p58 = scmp.ne.s32.totalorder %s44, %s45
      %p59 = scmp.eq.s32.totalorder %s25, 7
      %p60 = por %p58, %p59
      %p62 = scmp.ne.s32.totalorder %s45, %s61
      %p63 = scmp.eq.s32.totalorder %s25, 0
      %p64 = por %p62, %p63
      %s65 = ssub.s32 %s27, %s34
      %p66 = scmp.eq.s32.totalorder %s65, 0
      %s68 = sadd.s32 %s67, 1
      %s69 = scalar_select %p66, %s67, %s68
      %p72 = pneg %p66
      %p73 = scmp.eq.s32.totalorder %s19, 7
      %p74 = por %p72, %p73
      %p75 = scmp.ne.s32.totalorder %s67, %s70
      %p76 = scmp.eq.s32.totalorder %s19, 0
      %p77 = por %p75, %p76
      %p78 = scmp.ne.s32.totalorder %s67, %s70
      %p79 = scmp.eq.s32.totalorder %s24, 7
      %p80 = por %p78, %p79
      %p81 = scmp.ne.s32.totalorder %s70, %s71
      %p82 = scmp.eq.s32.totalorder %s24, 0
      %p83 = por %p81, %p82
      %p84 = scmp.ne.s32.totalorder %s70, %s71
      %p85 = scmp.eq.s32.totalorder %s25, 7
      %p86 = por %p84, %p85
      %p88 = scmp.ne.s32.totalorder %s71, %s87
      %p89 = scmp.eq.s32.totalorder %s25, 0
      %p90 = por %p88, %p89
      %s91 = ssub.s32 %s27, %s34
      %p92 = scmp.eq.s32.totalorder %s91, 0
      %s94 = sadd.s32 %s93, 1
      %s95 = scalar_select %p92, %s93, %s94
      %p98 = pneg %p92
      %p99 = scmp.eq.s32.totalorder %s19, 7
      %p100 = por %p98, %p99
      %p101 = scmp.ne.s32.totalorder %s93, %s96
      %p102 = scmp.eq.s32.totalorder %s19, 0
      %p103 = por %p101, %p102
      %p104 = scmp.ne.s32.totalorder %s93, %s96
      %p105 = scmp.eq.s32.totalorder %s24, 7
      %p106 = por %p104, %p105
      %p107 = scmp.ne.s32.totalorder %s96, %s97
      %p108 = scmp.eq.s32.totalorder %s24, 0
      %p109 = por %p107, %p108
      %p110 = scmp.ne.s32.totalorder %s96, %s97
      %p111 = scmp.eq.s32.totalorder %s25, 7
      %p112 = por %p110, %p111
      %p114 = scmp.ne.s32.totalorder %s97, %s113
      %p115 = scmp.eq.s32.totalorder %s25, 0
      %p116 = por %p114, %p115
      %s117 = ssub.s32 %s27, %s34
      %p118 = scmp.eq.s32.totalorder %s117, 0
      %s120 = sadd.s32 %s119, 1
      %s121 = scalar_select %p118, %s119, %s120
      %p124 = pneg %p118
      %p125 = scmp.eq.s32.totalorder %s19, 7
      %p126 = por %p124, %p125
      %p127 = scmp.ne.s32.totalorder %s119, %s122
      %p128 = scmp.eq.s32.totalorder %s19, 0
      %p129 = por %p127, %p128
      %p130 = scmp.ne.s32.totalorder %s119, %s122
      %p131 = scmp.eq.s32.totalorder %s24, 7
      %p132 = por %p130, %p131
      %p133 = scmp.ne.s32.totalorder %s122, %s123
      %p134 = scmp.eq.s32.totalorder %s24, 0
      %p135 = por %p133, %p134
      %p136 = scmp.ne.s32.totalorder %s122, %s123
      %p137 = scmp.eq.s32.totalorder %s25, 7
      %p138 = por %p136, %p137
      %p140 = scmp.ne.s32.totalorder %s123, %s139
      %p141 = scmp.eq.s32.totalorder %s25, 0
      %p142 = por %p140, %p141
      %s143 = ssub.s32 %s27, %s34
      %p144 = scmp.eq.s32.totalorder %s143, 0
      %s146 = sadd.s32 %s145, 1
      %s147 = scalar_select %p144, %s145, %s146
      %p150 = pneg %p144
      %p151 = scmp.eq.s32.totalorder %s19, 7
      %p152 = por %p150, %p151
      %p153 = scmp.ne.s32.totalorder %s145, %s148
      %p154 = scmp.eq.s32.totalorder %s19, 0
      %p155 = por %p153, %p154
      %p156 = scmp.ne.s32.totalorder %s145, %s148
      %p157 = scmp.eq.s32.totalorder %s24, 7
      %p158 = por %p156, %p157
      %p159 = scmp.ne.s32.totalorder %s148, %s149
      %p160 = scmp.eq.s32.totalorder %s24, 0
      %p161 = por %p159, %p160
      %p162 = scmp.ne.s32.totalorder %s148, %s149
      %p163 = scmp.eq.s32.totalorder %s25, 7
      %p164 = por %p162, %p163
      %p166 = scmp.ne.s32.totalorder %s149, %s165
      %p167 = scmp.eq.s32.totalorder %s25, 0
      %p168 = por %p166, %p167
      %s169 = ssub.s32 %s27, %s34
      %p170 = scmp.eq.s32.totalorder %s169, 0
      %s172 = sadd.s32 %s171, 1
      %s173 = scalar_select %p170, %s171, %s172
      %p176 = pneg %p170
      %p177 = scmp.eq.s32.totalorder %s19, 7
      %p178 = por %p176, %p177
      %p179 = scmp.ne.s32.totalorder %s171, %s174
      %p180 = scmp.eq.s32.totalorder %s19, 0
      %p181 = por %p179, %p180
      %p182 = scmp.ne.s32.totalorder %s171, %s174
      %p183 = scmp.eq.s32.totalorder %s24, 7
      %p184 = por %p182, %p183
      %p185 = scmp.ne.s32.totalorder %s174, %s175
      %p186 = scmp.eq.s32.totalorder %s24, 0
      %p187 = por %p185, %p186
      %p188 = scmp.ne.s32.totalorder %s174, %s175
      %p189 = scmp.eq.s32.totalorder %s25, 7
      %p190 = por %p188, %p189
      %p192 = scmp.ne.s32.totalorder %s175, %s191
      %p193 = scmp.eq.s32.totalorder %s25, 0
      %p194 = por %p192, %p193
      %s195 = ssub.s32 %s27, %s34
      %p196 = scmp.eq.s32.totalorder %s195, 0
      %s198 = sadd.s32 %s197, 1
      %s199 = scalar_select %p196, %s197, %s198
      %p202 = pneg %p196
      %p203 = scmp.eq.s32.totalorder %s19, 7
      %p204 = por %p202, %p203
      %p205 = scmp.ne.s32.totalorder %s197, %s200
      %p206 = scmp.eq.s32.totalorder %s19, 0
      %p207 = por %p205, %p206
      %p208 = scmp.ne.s32.totalorder %s197, %s200
      %p209 = scmp.eq.s32.totalorder %s24, 7
      %p210 = por %p208, %p209
      %p211 = scmp.ne.s32.totalorder %s200, %s201
      %p212 = scmp.eq.s32.totalorder %s24, 0
      %p213 = por %p211, %p212
      %p214 = scmp.ne.s32.totalorder %s200, %s201
      %p215 = scmp.eq.s32.totalorder %s25, 7
      %p216 = por %p214, %p215
      %p218 = scmp.ne.s32.totalorder %s201, %s217
      %p219 = scmp.eq.s32.totalorder %s25, 0
      %p220 = por %p218, %p219
      %s221 = ssub.s32 %s26, %s38
      %p222 = scmp.eq.s32.totalorder %s221, 0
      %s224 = sadd.s32 %s223, 1
      %s225 = scalar_select %p222, %s223, %s224
      %p228 = pneg %p222
      %p229 = scmp.eq.s32.totalorder %s19, 7
      %p230 = por %p228, %p229
      %p231 = scmp.ne.s32.totalorder %s223, %s226
      %p232 = scmp.eq.s32.totalorder %s19, 0
      %p233 = por %p231, %p232
      %p234 = scmp.ne.s32.totalorder %s223, %s226
      %p235 = scmp.eq.s32.totalorder %s24, 7
      %p236 = por %p234, %p235
      %p237 = scmp.ne.s32.totalorder %s226, %s227
      %p238 = scmp.eq.s32.totalorder %s24, 0
      %p239 = por %p237, %p238
      %p240 = scmp.ne.s32.totalorder %s226, %s227
      %p241 = scmp.eq.s32.totalorder %s25, 7
      %p242 = por %p240, %p241
      %p244 = scmp.ne.s32.totalorder %s227, %s243
      %p245 = scmp.eq.s32.totalorder %s25, 0
      %p246 = por %p244, %p245
      %p247 = scmp.le.s32.totalorder 1, %s19
      %p248 = scmp.lt.s32.totalorder %s19, 9
      %p249 = pnand %p247, %p248
      %p250 = pneg %p249
      // Predicated region
      $region9: #{tpu_custom_call.1} parent=5 // pred_check
        _
      $region10: #{tpu_custom_call.1} parent=5 // pred_check_branch
        %252 = sbr.rel (%p249) target = $region12
      $region11: #{tpu_custom_call.1} parent=5 // pred_region
        %s253 = ssub.s32 %s19, 1
      $region12: #{tpu_custom_call.1} parent=5 // pred_fallthru
        _
      %p254 = scmp.lt.s32.totalorder %s19, 8
      // Predicated region
      $region13: #{tpu_custom_call.1} parent=5 // pred_check
        %p255 = pneg %p254
      $region14: #{tpu_custom_call.1} parent=5 // pred_check_branch
        %257 = sbr.rel (%p255) target = $region16
      $region15: #{tpu_custom_call.1} parent=5 // pred_region
        // Predicated region
        $region17: #{tpu_custom_call.1} parent=15 // pred_check
          %p258 = pneg %p51
        $region18: #{tpu_custom_call.1} parent=15 // pred_check_branch
          %260 = sbr.rel (%p258) target = $region20
        $region19: #{tpu_custom_call.1} parent=15 // pred_region
          %p261 = scmp.lt.s32.totalorder %s26, 1
          %s262 = scalar_select %p261, %s26, 1
          %s263 = smul.addr %s262, 8
          %s264 = scalar_lea.vmem %s0, %s263
        $region20: #{tpu_custom_call.1} parent=15 // pred_fallthru
          _
        // Predicated region
        $region21: #{tpu_custom_call.1} parent=15 // pred_check
          %p265 = pneg %p77
        $region22: #{tpu_custom_call.1} parent=15 // pred_check_branch
          %267 = sbr.rel (%p265) target = $region24
        $region23: #{tpu_custom_call.1} parent=15 // pred_region
          %p268 = scmp.lt.s32.totalorder %s27, 3
          %s269 = scalar_select %p268, %s27, 3
          %s270 = scalar_lea.vmem %s1, %s269
        $region24: #{tpu_custom_call.1} parent=15 // pred_fallthru
          _
        // Predicated region
        $region25: #{tpu_custom_call.1} parent=15 // pred_check
          %p271 = pneg %p103
        $region26: #{tpu_custom_call.1} parent=15 // pred_check_branch
          %273 = sbr.rel (%p271) target = $region28
        $region27: #{tpu_custom_call.1} parent=15 // pred_region
          %p274 = scmp.lt.s32.totalorder %s27, 3
          %s275 = scalar_select %p274, %s27, 3
          %s276 = scalar_lea.vmem %s2, %s275
        $region28: #{tpu_custom_call.1} parent=15 // pred_fallthru
          _
        // Predicated region
        $region29: #{tpu_custom_call.1} parent=15 // pred_check
          %p277 = pneg %p129
        $region30: #{tpu_custom_call.1} parent=15 // pred_check_branch
          %279 = sbr.rel (%p277) target = $region32
        $region31: #{tpu_custom_call.1} parent=15 // pred_region
          %p280 = scmp.lt.s32.totalorder %s27, 3
          %s281 = scalar_select %p280, %s27, 3
          %s282 = smul.addr %s281, 8
          %s283 = scalar_lea.vmem %s3, %s282
        $region32: #{tpu_custom_call.1} parent=15 // pred_fallthru
          _
        // Predicated region
        $region33: #{tpu_custom_call.1} parent=15 // pred_check
          %p284 = pneg %p155
        $region34: #{tpu_custom_call.1} parent=15 // pred_check_branch
          %286 = sbr.rel (%p284) target = $region36
        $region35: #{tpu_custom_call.1} parent=15 // pred_region
          %p287 = scmp.lt.s32.totalorder %s27, 3
          %s288 = scalar_select %p287, %s27, 3
          %s289 = scalar_lea.vmem %s4, %s288
        $region36: #{tpu_custom_call.1} parent=15 // pred_fallthru
          _
        // Predicated region
        $region37: #{tpu_custom_call.1} parent=15 // pred_check
          %p290 = pneg %p181
        $region38: #{tpu_custom_call.1} parent=15 // pred_check_branch
          %292 = sbr.rel (%p290) target = $region40
        $region39: #{tpu_custom_call.1} parent=15 // pred_region
          %s293 = sand.u32 %s171, 1
          %s294 = scalar_lea.sflag [#allocation4], %s293
          %s295 = sand.u32 %s171, 1
          %s296 = smul.addr %s295, 32
          %s297 = scalar_lea.vmem [#allocation3], %s296
          %299 = vsyncadd %s294, 0
          %s300 = smul.addr %s27, 4
          %s301 = smul.addr %s300, 8
          %s302 = scalar_lea.hbm %s5, %s301
          %s303 = sshll.u32 %s302, 4
          %s304 = int_to_ptr.hbm [resolvable:$true] %s303
          %s305 = sshll.u32 %s297, 4
          %s306 = int_to_ptr.vmem [resolvable:$true] %s305
          %311 = dma.hbm_to_vmem [thread:$0]  %s304, 512, %s306, %s294, 128, 128, 8
        $region40: #{tpu_custom_call.1} parent=15 // pred_fallthru
          _
        // Predicated region
        $region41: #{tpu_custom_call.1} parent=15 // pred_check
          %p312 = pneg %p207
        $region42: #{tpu_custom_call.1} parent=15 // pred_check_branch
          %314 = sbr.rel (%p312) target = $region44
        $region43: #{tpu_custom_call.1} parent=15 // pred_region
          %p315 = scmp.lt.s32.totalorder %s27, 3
          %s316 = scalar_select %p315, %s27, 3
          %s317 = scalar_lea.vmem %s6, %s316
        $region44: #{tpu_custom_call.1} parent=15 // pred_fallthru
          _
      $region16: #{tpu_custom_call.1} parent=5 // pred_fallthru
        _
      %p318 = scmp.le.s32.totalorder 1, %s19
      %p319 = scmp.lt.s32.totalorder %s19, 9
      %p320 = pnand %p318, %p319
      %p321 = pneg %p320
      // Predicated region
      $region45: #{tpu_custom_call.1} parent=5 // pred_check
        _
      $region46: #{tpu_custom_call.1} parent=5 // pred_check_branch
        %323 = sbr.rel (%p320) target = $region48
      $region47: #{tpu_custom_call.1} parent=5 // pred_region
        %s324 = ssub.s32 %s19, 1
        %s325 = sand.u32 %s174, 1
        %s326 = scalar_lea.sflag [#allocation4], %s325
        %s327 = sand.u32 %s174, 1
        %s328 = smul.addr %s327, 32
        %s329 = scalar_lea.vmem [#allocation3], %s328
        // Predicated region
        $region49: #{tpu_custom_call.1} parent=47 // pred_check
          %p330 = pneg %p187
        $region50: #{tpu_custom_call.1} parent=47 // pred_check_branch
          %332 = sbr.rel (%p330) target = $region52
        $region51: #{tpu_custom_call.1} parent=47 // pred_region
          %334 = dma.done %s326, 512
        $region52: #{tpu_custom_call.1} parent=47 // pred_fallthru
          _
        %p335 = scmp.lt.s32.totalorder %s28, 1
        %s336 = scalar_select %p335, %s28, 1
        %s337 = smul.addr %s336, 8
        %s338 = scalar_lea.vmem %s0, %s337
        %p339 = pneg %p57
        %p340 = pneg %p54
        %p341 = scmp.lt.s32.totalorder %s29, 3
        %s342 = scalar_select %p341, %s29, 3
        %s343 = scalar_lea.vmem %s1, %s342
        %p344 = pneg %p83
        %p345 = pneg %p80
        %p346 = scmp.lt.s32.totalorder %s29, 3
        %s347 = scalar_select %p346, %s29, 3
        %s348 = scalar_lea.vmem %s2, %s347
        %p349 = pneg %p109
        %p350 = pneg %p106
        %p351 = scmp.lt.s32.totalorder %s29, 3
        %s352 = scalar_select %p351, %s29, 3
        %s353 = smul.addr %s352, 8
        %s354 = scalar_lea.vmem %s3, %s353
        %p355 = pneg %p135
        %p356 = pneg %p132
        %p357 = scmp.lt.s32.totalorder %s29, 3
        %s358 = scalar_select %p357, %s29, 3
        %s359 = scalar_lea.vmem %s4, %s358
        %p360 = pneg %p161
        %p361 = pneg %p158
        %s362 = sand.u32 %s174, 1
        %s363 = scalar_lea.sflag [#allocation4], %s362
        %s364 = sand.u32 %s174, 1
        %s365 = smul.addr %s364, 32
        %s366 = scalar_lea.vmem [#allocation3], %s365
        %p367 = pneg %p187
        %p368 = pneg %p184
        %p369 = scmp.lt.s32.totalorder %s29, 3
        %s370 = scalar_select %p369, %s29, 3
        %s371 = scalar_lea.vmem %s6, %s370
        %p372 = pneg %p213
        %p373 = pneg %p210
        %p374 = pneg %p239
        %p375 = pneg %p236
        %s376 = sand.u32 %s226, 1
        %s377 = scalar_lea.sflag [#allocation5], %s376
        %s378 = sand.u32 %s226, 1
        %s379 = smul.addr %s378, 8
        %s380 = scalar_lea.vmem [#allocation6], %s379
        %p381 = scmp.lt.s32.totalorder %s28, 1
        %s382 = scalar_select %p381, %s28, 1
        %s383 = smul.addr %s382, 8
        %s384 = scalar_lea.vmem %s0, %s383
        %p385 = scmp.lt.s32.totalorder %s29, 3
        %s386 = scalar_select %p385, %s29, 3
        %s387 = scalar_lea.vmem %s1, %s386
        %p388 = scmp.lt.s32.totalorder %s29, 3
        %s389 = scalar_select %p388, %s29, 3
        %s390 = scalar_lea.vmem %s2, %s389
        %p391 = scmp.lt.s32.totalorder %s29, 3
        %s392 = scalar_select %p391, %s29, 3
        %s393 = smul.addr %s392, 8
        %s394 = scalar_lea.vmem %s3, %s393
        %p395 = scmp.lt.s32.totalorder %s29, 3
        %s396 = scalar_select %p395, %s29, 3
        %s397 = scalar_lea.vmem %s4, %s396
        %p398 = scmp.lt.s32.totalorder %s29, 3
        %s399 = scalar_select %p398, %s29, 3
        %s400 = scalar_lea.vmem %s6, %s399
        %p401 = scmp.eq.s32.totalorder %s29, 0
        // Predicated region
        $region53: #{tpu_custom_call.1} parent=47 // pred_check
          %p402 = pneg %p401
        $region54: #{tpu_custom_call.1} parent=47 // pred_check_branch
          %404 = sbr.rel (%p402) target = $region56
        $region55: #{tpu_custom_call.1} parent=47 // pred_region
          %v405 = vld [vmem:[%s384] sm:$0xff]
          %vm406 = vcmask 261120
          %407 = vst.msk [vmem:[#allocation2] sm:$0xff] %vm406, %v405
        $region56: #{tpu_custom_call.1} parent=47 // pred_fallthru
          _
        %v408 = vld [vmem:[#allocation2] sm:$0xff]
        %vm409 = vcmask 261120
        %v410 = vsel %vm409, %v408, 0.0
        %411 = vadd.xlane.f32.xlu0 %v410
        %v412 = vpop.xlane.xlu0 %411
        %v413 = vrcp.pop 32.0
        %v414 = vmul.f32 32.0, %v413
        %v415 = vsub.f32 1.0, %v414
        %v416 = vmul.f32 %v413, %v415
        %v417 = vadd.f32 %v413, %v416
        %vm418 = vweird.f32 %v413
        %v419 = vsel %vm418, %v413, %v417
        %v420 = vmul.f32 %v412, %v419
        %v421 = vsub.f32 %v408, %v420
        %v422 = vmul.f32 %v421, %v421
        %v423 = vsel %vm409, %v422, 0.0
        %424 = vadd.xlane.f32.xlu0 %v423
        %v425 = vpop.xlane.xlu0 %424
        %v426 = vmul.f32 %v425, %v419
        %v427 = vadd.f32 %v426, 1e-06
        %v428 = vrsqrt.pop %v427
        %v429 = vmul.f32 %v428, %v427
        %v430 = vmul.f32 %v429, %v428
        %v431 = vmul.f32 0.5, %v430
        %v432 = vsub.f32 1.5, %v431
        %v433 = vmul.f32 %v428, %v432
        %vm434 = vweird.f32 %v427
        %vm435 = vweird.f32 %v428
        %vm436 = vmor %vm434, %vm435
        %v437 = vsel %vm436, %v428, %v433
        %v438 = vmul.f32 %v421, %v437
        %v439 = vld [vmem:[%s387] sm:$0x1]
        %v441 = vperm.slane %v439, 0
        %v443 = vmul.f32 %v438, %v441
        %v444 = vld [vmem:[%s390] sm:$0x1]
        %v446 = vperm.slane %v444, 0
        %v448 = vadd.f32 %v443, %v446
        %v449 = vlaneseq
        %v450 = vshrl.u32 %v449, 7
        %v451 = vld [vmem:[%s394] sm:$0x7f]
        %v452 = vrot.slane %v448, 5
        %vm453 = vcmp.ge.s32.totalorder %v450, 3
        %v454 = vsel %vm453, 1, 0
        %vm455 = vcmp.eq.s32.totalorder %v454, 1
        %v456 = vsel %vm455, %v452, 0.0
        %v457 = vperm.slane %v451, 0
        %v458 = vmul.f32 %v456, %v457
        %v459 = vrot.slane %v448, 6
        %vm460 = vcmp.ge.s32.totalorder %v450, 2
        %v461 = vsel %vm460, 1, 0
        %vm462 = vcmp.eq.s32.totalorder %v461, 1
        %v463 = vsel %vm462, %v459, 0.0
        %v464 = vperm.slane %v451, 1
        %v465 = vmul.f32 %v463, %v464
        %v466 = vadd.f32 %v458, %v465
        %v467 = vrot.slane %v448, 7
        %vm468 = vcmp.ge.s32.totalorder %v450, 1
        %v469 = vsel %vm468, 1, 0
        %vm470 = vcmp.eq.s32.totalorder %v469, 1
        %v471 = vsel %vm470, %v467, 0.0
        %v472 = vperm.slane %v451, 2
        %v473 = vmul.f32 %v471, %v472
        %v474 = vadd.f32 %v466, %v473
        %v475 = vperm.slane %v451, 3
        %v476 = vmul.f32 %v448, %v475
        %v477 = vadd.f32 %v474, %v476
        %v478 = vrot.slane %v448, 1
        %vm479 = vcmp.lt.s32.totalorder %v450, 7
        %v480 = vsel %vm479, 1, 0
        %vm481 = vcmp.eq.s32.totalorder %v480, 1
        %v482 = vsel %vm481, %v478, 0.0
        %v483 = vperm.slane %v451, 4
        %v484 = vmul.f32 %v482, %v483
        %v485 = vadd.f32 %v477, %v484
        %v486 = vrot.slane %v448, 2
        %vm487 = vcmp.lt.s32.totalorder %v450, 6
        %v488 = vsel %vm487, 1, 0
        %vm489 = vcmp.eq.s32.totalorder %v488, 1
        %v490 = vsel %vm489, %v486, 0.0
        %v491 = vperm.slane %v451, 5
        %v492 = vmul.f32 %v490, %v491
        %v493 = vadd.f32 %v485, %v492
        %v494 = vrot.slane %v448, 3
        %vm495 = vcmp.lt.s32.totalorder %v450, 5
        %v496 = vsel %vm495, 1, 0
        %vm497 = vcmp.eq.s32.totalorder %v496, 1
        %v498 = vsel %vm497, %v494, 0.0
        %v499 = vperm.slane %v451, 6
        %v500 = vmul.f32 %v498, %v499
        %v501 = vadd.f32 %v493, %v500
        %v502 = vld [vmem:[%s397] sm:$0x1]
        %v504 = vperm.slane %v502, 0
        %v506 = vadd.f32 %v501, %v504
        %v507 = vld [vmem:[%s329] sm:$0xff]
        %v508 = vld [vmem:[%s329 + $0x8] sm:$0xff]
        %v509 = vld [vmem:[%s329 + $0x10] sm:$0xff]
        %v510 = vld [vmem:[%s329 + $0x18] sm:$0xff]
        %v511 = vld [vmem:[%s400] sm:$0x1]
        %v513 = vperm.slane %v511, 0
        %v516 = vsel %vm409, %v506, 0
        %518 = vmatpush.msra.mxu0 0.0
        %519 = vmatpush.msra.mxu0 0.0
        %520 = vmatpush.msra.mxu0 0.0
        %521 = vmatpush.msra.mxu0 0.0
        %522 = vmatpush.msra.mxu0 0.0
        %523 = vmatpush.msra.mxu0 0.0
        %524 = vmatpush.msra.mxu0 0.0
        %525 = vmatpush.msra.mxu0 0.0
        %526 = vmatpush.msra.mxu0 0.0
        %527 = vmatpush.msra.mxu0 0.0
        %528 = vmatpush.msra.mxu0 0.0
        %529 = vmatpush.msra.mxu0 0.0
        %530 = vmatpush.msra.mxu0 %v510
        %531 = vmatpush.msra.mxu0 %v509
        %532 = vmatpush.msra.mxu0 %v508
        %533 = vmatpush.msra.mxu0 %v507
        %534 = vmatmul.f32.gmra.mxu0 %v516
        %v535 = vpop.f32.mrf.mxu0
        %v536 = vadd.f32 %v513, %v535
        %537 = vdwg.mxu0
        %v538 = vadd.f32 %v536, %v408
        %539 = vst.msk [vmem:[#allocation2] sm:$0xff] %vm409, %v538
        %p540 = scmp.eq.s32.totalorder %s29, 3
        // Predicated region
        $region57: #{tpu_custom_call.1} parent=47 // pred_check
          %p541 = pneg %p540
        $region58: #{tpu_custom_call.1} parent=47 // pred_check_branch
          %543 = sbr.rel (%p541) target = $region60
        $region59: #{tpu_custom_call.1} parent=47 // pred_region
          %544 = vst.msk [vmem:[%s380] sm:$0xff] %vm409, %v538
        $region60: #{tpu_custom_call.1} parent=47 // pred_fallthru
          _
        %s545 = sand.u32 %s226, 1
        %s546 = scalar_lea.sflag [#allocation5], %s545
        %s547 = sand.u32 %s226, 1
        %s548 = smul.addr %s547, 8
        %s549 = scalar_lea.vmem [#allocation6], %s548
        // Predicated region
        $region61: #{tpu_custom_call.1} parent=47 // pred_check
          %p550 = pneg %p236
        $region62: #{tpu_custom_call.1} parent=47 // pred_check_branch
          %552 = sbr.rel (%p550) target = $region64
        $region63: #{tpu_custom_call.1} parent=47 // pred_region
          %554 = vsyncadd %s546, 0
          %s555 = smul.addr %s28, 8
          %s556 = scalar_lea.hbm %s7, %s555
          %s558 = sshll.u32 %s549, 4
          %s559 = int_to_ptr.vmem [resolvable:$true] %s558
          %s560 = sshll.u32 %s556, 4
          %s561 = int_to_ptr.hbm [resolvable:$true] %s560
          %563 = dma.vmem_to_hbm [thread:$0]  %s559, 128, %s561, %s546
        $region64: #{tpu_custom_call.1} parent=47 // pred_fallthru
          _
      $region48: #{tpu_custom_call.1} parent=5 // pred_fallthru
        _
      %p564 = scmp.le.s32.totalorder 2, %s19
      // Predicated region
      $region65: #{tpu_custom_call.1} parent=5 // pred_check
        %p565 = pneg %p564
      $region66: #{tpu_custom_call.1} parent=5 // pred_check_branch
        %567 = sbr.rel (%p565) target = $region68
      $region67: #{tpu_custom_call.1} parent=5 // pred_region
        %s568 = ssub.s32 %s19, 2
        // Predicated region
        $region69: #{tpu_custom_call.1} parent=67 // pred_check
          %p569 = pneg %p242
        $region70: #{tpu_custom_call.1} parent=67 // pred_check_branch
          %571 = sbr.rel (%p569) target = $region72
        $region71: #{tpu_custom_call.1} parent=67 // pred_region
          %s572 = sand.u32 %s227, 1
          %s573 = scalar_lea.sflag [#allocation5], %s572
          %s574 = sand.u32 %s227, 1
          %s575 = smul.addr %s574, 8
          %s576 = scalar_lea.vmem [#allocation6], %s575
          %578 = dma.done %s573, 128
        $region72: #{tpu_custom_call.1} parent=67 // pred_fallthru
          _
      $region68: #{tpu_custom_call.1} parent=5 // pred_fallthru
        _
    $region6: #{tpu_custom_call.1} parent=1 // loop_footer
      %s23 = sadd.s32 1, %s19
    $region7: #{tpu_custom_call.1} parent=1 // loop_footer_branch
      %18 = sbr.rel target = $region3
    $region8: #{tpu_custom_call.1} parent=1 // loop_exit
      _
    %579 = vsyncpa [#allocation4], 1
    %s580 = scalar_lea.sflag [#allocation4], 1
    %581 = vsyncpa %s580, 1
    %582 = vsyncpa [#allocation5], 1
    %s583 = scalar_lea.sflag [#allocation5], 1
    %584 = vsyncpa %s583, 1

</llo_original>
